<compile_context>
chip_gen: v7x
topology: tpu7x:2x2x1
jax: 0.10.0
libtpu: 0.0.40
codegen_flags: <defaults>
</compile_context>

<pallas_src>
import jax
import jax.numpy as jnp
from jax.experimental import pallas as pl
from jax.experimental.pallas import tpu as pltpu


def rnn_attention_kernel(enc_ref, att2_ref, we_ref, be_ref, wf_ref, bf_ref,
                         awe_ref, alpha_ref):
    # enc_ref:   (BB, P, D) bf16       att2_ref: (BB, D) f32 (precomputed)
    # we_ref:    (D, D) bf16 (pre-transposed: in x out), VMEM-resident
    # be_ref:    (1, D) f32            wf_ref: (1, D) f32 (full_att row)
    # bf_ref:    (1, 1) f32 in SMEM
    # awe_ref:   (BB, D) f32           alpha_ref: (BB, P) f32
    BB, P, D = enc_ref.shape

    enc_f32 = enc_ref[...].astype(jnp.float32)            # (BB, P, D)

    # Fused encoder projection: one (BB*P, D) @ (D, D) matmul on the bf16 MXU
    # path with f32 accumulation (reshape done in f32, operands cast to bf16).
    enc2d = enc_f32.reshape(BB * P, D).astype(jnp.bfloat16)
    att1 = jnp.dot(enc2d, we_ref[...],
                   preferred_element_type=jnp.float32)     # (BB*P, D)
    att1 = att1.reshape(BB, P, D) + be_ref[...]            # + encoder bias

    # relu(att1 + att2.unsqueeze(1)); att2 was hoisted to the wrapper.
    h = jnp.maximum(att1 + att2_ref[...][:, None, :], 0.0)  # (BB, P, D)

    # full_att projection to one scalar per pixel: VPU multiply + lane reduce
    # (avoids an N=1 MXU matmul).
    s = jnp.sum(h * wf_ref[...], axis=-1) + bf_ref[0, 0]    # (BB, P)

    # softmax over the pixel axis (lane axis); approx reciprocal -> EUP slot.
    m = jnp.max(s, axis=-1, keepdims=True)
    e = jnp.exp(s - m)
    denom = jnp.sum(e, axis=-1, keepdims=True)
    alpha = e * pl.reciprocal(denom, approx=True)           # (BB, P)

    # attention-weighted encoding: sum_P alpha * encoder_out (f32 elementwise).
    awe = jnp.sum(enc_f32 * alpha[:, :, None], axis=1)      # (BB, D)

    awe_ref[...] = awe
    alpha_ref[...] = alpha


def _pick_block_b(B, P, D):
    """Pick the batch block size BB.

    Goals: divide B (zero batch padding), stay inside a conservative VMEM
    budget (sized so it also fits v7x's 64 MiB), and give the fused matmul
    BB*P >= ~512 rows when the batch allows.  Prefers 8-aligned blocks when
    the batch must be split.
    """
    # Rough per-batch-row working set: bf16 encoder block (x2 pipeline
    # buffers) + ~3 f32 (P, D) temporaries + small vectors.
    bytes_per_row = P * D * (2 * 2 + 3 * 4) + 16 * D + 8 * P
    vmem_budget = 32 * 1024 * 1024            # leave headroom on v7x (64 MiB)
    cap = max(1, vmem_budget // max(bytes_per_row, 1))
    target = max(1, -(-512 // max(P, 1)))     # ceil(512 / P) -> >= 512 rows
    want = max(1, min(B, cap, target))

    if B <= want:
        bb = B                                # single block, no padding
    else:
        bb = 0
        for d in range(8, want + 1, 8):       # largest 8-aligned divisor of B
            if B % d == 0:
                bb = d
        if bb == 0:                           # awkward batch: 8-aligned + pad
            bb = max(8, (want // 8) * 8)

    # Keep >= 2 grid steps when halving still leaves a well-filled MXU
    # (v7x megacore shards the "parallel" grid axis across its 2 TensorCores).
    if bb == B and B % 2 == 0 and (B // 2) % 8 == 0 and (B // 2) * P >= 256:
        bb = B // 2
    return bb


def rnn_attention(encoder_out, decoder_hidden, params, block_b=None):
    """encoder_out: (B, P, D); decoder_hidden: (B, D). Returns (awe, alpha)."""
    we, be, wd, bd, wf, bf = params
    B, P, D = encoder_out.shape

    # ---- hoisted decoder projection: one (B, D) @ (D, D) matmul in XLA ----
    att2 = (decoder_hidden.astype(jnp.float32) @ wd.astype(jnp.float32).T
            + bd.astype(jnp.float32))                        # (B, D) f32

    # ---- block size selection (no padding in the default path) ----
    BB = _pick_block_b(B, P, D) if block_b is None else max(1, min(block_b, B))
    num_blocks = pl.cdiv(B, BB)
    Bpad = num_blocks * BB
    enc = encoder_out
    if Bpad != B:  # only for awkward batches / explicit non-dividing block_b
        pad = Bpad - B
        enc = jnp.pad(enc, ((0, pad), (0, 0), (0, 0)))
        att2 = jnp.pad(att2, ((0, pad), (0, 0)))

    # bf16 encoder stream + bf16 MXU weights (in a real pipeline the producer
    # already emits bf16 / the cast fuses upstream).
    enc_bf = enc if enc.dtype == jnp.bfloat16 else enc.astype(jnp.bfloat16)
    we_t = we.T.astype(jnp.bfloat16)                 # (D, D) in x out
    be2 = be.reshape(1, D).astype(jnp.float32)
    wf_row = wf.reshape(1, D).astype(jnp.float32)
    bf2 = bf.reshape(1, 1).astype(jnp.float32)

    cost = pl.CostEstimate(
        flops=2 * Bpad * P * D * D          # fused encoder projection
              + 4 * Bpad * P * D            # full_att reduce + awe reduce
              + 6 * Bpad * P,               # softmax elementwise
        transcendentals=Bpad * P,           # exp in softmax
        bytes_accessed=2 * Bpad * P * D     # encoder block (bf16)
                       + 4 * Bpad * D       # att2
                       + 2 * D * D + 8 * D + 4            # resident weights
                       + 4 * (Bpad * D + Bpad * P),       # outputs
    )

    grid_spec = pltpu.PrefetchScalarGridSpec(
        num_scalar_prefetch=0,
        grid=(num_blocks,),
        in_specs=[
            pl.BlockSpec((BB, P, D), lambda b: (b, 0, 0)),   # encoder block
            pl.BlockSpec((BB, D), lambda b: (b, 0)),         # att2 block
            # Grid-invariant weights: untiled, single VMEM-resident copy
            # (no per-step double buffering).
            pl.BlockSpec(memory_space=pltpu.MemorySpace.VMEM),   # W_enc^T
            pl.BlockSpec(memory_space=pltpu.MemorySpace.VMEM),   # b_enc
            pl.BlockSpec(memory_space=pltpu.MemorySpace.VMEM),   # W_full row
            pl.BlockSpec(memory_space=pltpu.MemorySpace.SMEM),   # b_full scalar
        ],
        out_specs=[
            pl.BlockSpec((BB, D), lambda b: (b, 0)),         # awe  (lane-dense)
            pl.BlockSpec((BB, P), lambda b: (b, 0)),         # alpha (lane-dense)
        ],
    )

    awe, alpha = pl.pallas_call(
        rnn_attention_kernel,
        out_shape=(
            jax.ShapeDtypeStruct((Bpad, D), jnp.float32),
            jax.ShapeDtypeStruct((Bpad, P), jnp.float32),
        ),
        grid_spec=grid_spec,
        compiler_params=pltpu.CompilerParams(
            dimension_semantics=("parallel",),
            vmem_limit_bytes=64 * 1024 * 1024),
        cost_estimate=cost,
    )(enc_bf, att2, we_t, be2, wf_row, bf2)

    return awe[:B], alpha[:B]


def reference(encoder_out, decoder_hidden, params):
    we, be, wd, bd, wf, bf = params
    att1 = encoder_out @ we.T + be                   # (B, P, D)
    att2 = decoder_hidden @ wd.T + bd                # (B, D)
    att = jnp.maximum(att1 + att2[:, None, :], 0.0) @ wf.T + bf   # (B, P, 1)
    att = att[..., 0]                                # (B, P)
    alpha = jax.nn.softmax(att, axis=1)
    awe = (encoder_out * alpha[..., None]).sum(axis=1)
    return awe, alpha


def init_params(key, dim):
    """Deterministic init mimicking nn.Linear default (uniform +/- 1/sqrt(fan_in))."""
    ks = jax.random.split(key, 6)
    bound = 1.0 / (dim ** 0.5)
    we = jax.random.uniform(ks[0], (dim, dim), jnp.float32, -bound, bound)
    be = jax.random.uniform(ks[1], (dim,), jnp.float32, -bound, bound)
    wd = jax.random.uniform(ks[2], (dim, dim), jnp.float32, -bound, bound)
    bd = jax.random.uniform(ks[3], (dim,), jnp.float32, -bound, bound)
    wf = jax.random.uniform(ks[4], (1, dim), jnp.float32, -bound, bound)
    bf = jax.random.uniform(ks[5], (1,), jnp.float32, -bound, bound)
    return we, be, wd, bd, wf, bf


if __name__ == "__main__":
    B, P, D = 2, 16, 32   # batch, num_pixels, dim
    key = jax.random.PRNGKey(0)
    k_enc, k_dec, k_par = jax.random.split(key, 3)

    encoder_out = jax.random.normal(k_enc, (B, P, D), jnp.float32)
    decoder_hidden = jax.random.normal(k_dec, (B, D), jnp.float32)
    params = init_params(k_par, D)

    awe, alpha = jax.jit(rnn_attention)(encoder_out, decoder_hidden, params)
    jax.block_until_ready((awe, alpha))

    awe_ref, alpha_ref = reference(encoder_out, decoder_hidden, params)
    assert awe.shape == (B, D) and alpha.shape == (B, P)
    # bf16 encoder/weight stream + approx softmax reciprocal => relaxed tolerance.
    assert jnp.allclose(alpha, alpha_ref, atol=1e-2, rtol=2e-2)
    assert jnp.allclose(awe, awe_ref, atol=3e-2, rtol=3e-2)
    assert jnp.allclose(jnp.sum(alpha, axis=-1), 1.0, atol=1e-2)

    print("KERNEL_OK")
</pallas_src>

<mosaic_0001>
module attributes {stable_mosaic.version = 11 : i64} {
  func.func @rnn_attention_kernel(%arg0: i32, %arg1: memref<2x16x32xbf16, #tpu.memory_space<vmem>>, %arg2: memref<2x32xf32, #tpu.memory_space<vmem>>, %arg3: memref<32x32xbf16, #tpu.memory_space<vmem>>, %arg4: memref<1x32xf32, #tpu.memory_space<vmem>>, %arg5: memref<1x32xf32, #tpu.memory_space<vmem>>, %arg6: memref<1x1xf32, #tpu.memory_space<smem>>, %arg7: memref<2x32xf32, #tpu.memory_space<vmem>>, %arg8: memref<2x16xf32, #tpu.memory_space<vmem>>) attributes {dimension_semantics = [#tpu.dimension_semantics<parallel>], iteration_bounds = array<i64: 1>, scalar_prefetch = 0 : i64, scratch_operands = 0 : i64, tpu.core_type = #tpu.core_type<tc>, window_params = [{transform_indices = @transform_0, window_bounds = array<i64: 2, 16, 32>}, {transform_indices = @transform_1, window_bounds = array<i64: 2, 32>}, {pipeline_mode = #tpu.pipeline_mode<synchronous>, transform_indices = @transform_2, window_bounds = array<i64: 32, 32>}, {pipeline_mode = #tpu.pipeline_mode<synchronous>, transform_indices = @transform_3, window_bounds = array<i64: 1, 32>}, {pipeline_mode = #tpu.pipeline_mode<synchronous>, transform_indices = @transform_4, window_bounds = array<i64: 1, 32>}, {transform_indices = @transform_5, window_bounds = array<i64: 1, 1>}, {transform_indices = @transform_6, window_bounds = array<i64: 2, 32>}, {transform_indices = @transform_7, window_bounds = array<i64: 2, 16>}]} {
    %c0 = arith.constant 0 : index
    %c0_0 = arith.constant 0 : index
    %c0_1 = arith.constant 0 : index
    %0 = vector.load %arg1[%c0, %c0_0, %c0_1] : memref<2x16x32xbf16, #tpu.memory_space<vmem>>, vector<2x16x32xbf16>
    %1 = arith.extf %0 : vector<2x16x32xbf16> to vector<2x16x32xf32>
    %2 = vector.shape_cast %1 : vector<2x16x32xf32> to vector<32x32xf32>
    %3 = arith.truncf %2 : vector<32x32xf32> to vector<32x32xbf16>
    %c0_2 = arith.constant 0 : index
    %c0_3 = arith.constant 0 : index
    %4 = vector.load %arg3[%c0_2, %c0_3] : memref<32x32xbf16, #tpu.memory_space<vmem>>, vector<32x32xbf16>
    %cst = arith.constant dense<0.000000e+00> : vector<32x32xf32>
    %5 = tpu.matmul %3, %4, %cst {dimension_numbers = #tpu.dot_dimension_numbers<[1], [0], [0], [1], [0, 0, 1, 1], [], []>} : vector<32x32xbf16>, vector<32x32xbf16>, vector<32x32xf32> -> vector<32x32xf32>
    %6 = vector.shape_cast %5 : vector<32x32xf32> to vector<2x16x32xf32>
    %c0_4 = arith.constant 0 : index
    %c0_5 = arith.constant 0 : index
    %7 = vector.load %arg4[%c0_4, %c0_5] : memref<1x32xf32, #tpu.memory_space<vmem>>, vector<1x32xf32>
    %8 = vector.shape_cast %7 : vector<1x32xf32> to vector<1x1x32xf32>
    %9 = vector.broadcast %8 : vector<1x1x32xf32> to vector<2x16x32xf32>
    %10 = arith.addf %6, %9 : vector<2x16x32xf32>
    %c0_6 = arith.constant 0 : index
    %c0_7 = arith.constant 0 : index
    %11 = vector.load %arg2[%c0_6, %c0_7] : memref<2x32xf32, #tpu.memory_space<vmem>>, vector<2x32xf32>
    %12 = vector.shape_cast %11 : vector<2x32xf32> to vector<2x1x32xf32>
    %13 = vector.broadcast %12 : vector<2x1x32xf32> to vector<2x16x32xf32>
    %14 = arith.addf %10, %13 : vector<2x16x32xf32>
    %cst_8 = arith.constant 0.000000e+00 : f32
    %15 = vector.broadcast %cst_8 : f32 to vector<2x16x32xf32>
    %16 = arith.maximumf %14, %15 : vector<2x16x32xf32>
    %c0_9 = arith.constant 0 : index
    %c0_10 = arith.constant 0 : index
    %17 = vector.load %arg5[%c0_9, %c0_10] : memref<1x32xf32, #tpu.memory_space<vmem>>, vector<1x32xf32>
    %18 = vector.shape_cast %17 : vector<1x32xf32> to vector<1x1x32xf32>
    %19 = vector.broadcast %18 : vector<1x1x32xf32> to vector<2x16x32xf32>
    %20 = arith.mulf %16, %19 : vector<2x16x32xf32>
    %cst_11 = arith.constant dense<0.000000e+00> : vector<2x16xf32>
    %21 = vector.multi_reduction <add>, %20, %cst_11 [2] : vector<2x16x32xf32> to vector<2x16xf32>
    %c0_12 = arith.constant 0 : index
    %c0_13 = arith.constant 0 : index
    %22 = memref.load %arg6[%c0_12, %c0_13] : memref<1x1xf32, #tpu.memory_space<smem>>
    %23 = vector.broadcast %22 : f32 to vector<2x16xf32>
    %24 = arith.addf %21, %23 : vector<2x16xf32>
    %cst_14 = arith.constant dense<0xFF800000> : vector<2xf32>
    %25 = vector.multi_reduction <maximumf>, %24, %cst_14 [1] : vector<2x16xf32> to vector<2xf32>
    %26 = vector.shape_cast %25 : vector<2xf32> to vector<2x1xf32>
    %27 = vector.broadcast %26 : vector<2x1xf32> to vector<2x16xf32>
    %28 = arith.subf %24, %27 : vector<2x16xf32>
    %29 = math.exp %28 : vector<2x16xf32>
    %cst_15 = arith.constant dense<0.000000e+00> : vector<2xf32>
    %30 = vector.multi_reduction <add>, %29, %cst_15 [1] : vector<2x16xf32> to vector<2xf32>
    %31 = vector.shape_cast %30 : vector<2xf32> to vector<2x1xf32>
    %32 = tpu.reciprocal %31 {approx = true} : vector<2x1xf32> -> vector<2x1xf32>
    %33 = vector.broadcast %32 : vector<2x1xf32> to vector<2x16xf32>
    %34 = arith.mulf %29, %33 : vector<2x16xf32>
    %35 = vector.shape_cast %34 : vector<2x16xf32> to vector<2x16x1xf32>
    %36 = vector.broadcast %35 : vector<2x16x1xf32> to vector<2x16x32xf32>
    %37 = arith.mulf %1, %36 : vector<2x16x32xf32>
    %cst_16 = arith.constant dense<0.000000e+00> : vector<2x32xf32>
    %38 = vector.multi_reduction <add>, %37, %cst_16 [1] : vector<2x16x32xf32> to vector<2x32xf32>
    %c0_17 = arith.constant 0 : index
    %c0_18 = arith.constant 0 : index
    %39 = vector.load %arg7[%c0_17, %c0_18] : memref<2x32xf32, #tpu.memory_space<vmem>>, vector<2x32xf32>
    tpu.vector_store %arg7[%c0_17, %c0_18], %38 {strides = array<i32>} : memref<2x32xf32, #tpu.memory_space<vmem>>, vector<2x32xf32>,
    %c0_19 = arith.constant 0 : index
    %c0_20 = arith.constant 0 : index
    %40 = vector.load %arg8[%c0_19, %c0_20] : memref<2x16xf32, #tpu.memory_space<vmem>>, vector<2x16xf32>
    tpu.vector_store %arg8[%c0_19, %c0_20], %34 {strides = array<i32>} : memref<2x16xf32, #tpu.memory_space<vmem>>, vector<2x16xf32>,
    return
  }
  func.func @transform_0(%arg0: i32) -> (i32, i32, i32) {
    %c0_i32 = arith.constant 0 : i32
    %c0_i32_0 = arith.constant 0 : i32
    %c0_i32_1 = arith.constant 0 : i32
    return %arg0, %c0_i32, %c0_i32_0 : i32, i32, i32
  }
  func.func @transform_1(%arg0: i32) -> (i32, i32) {
    %c0_i32 = arith.constant 0 : i32
    %c0_i32_0 = arith.constant 0 : i32
    return %arg0, %c0_i32 : i32, i32
  }
  func.func @transform_2(%arg0: i32) -> (i32, i32) {
    %c0_i32 = arith.constant 0 : i32
    %c0_i32_0 = arith.constant 0 : i32
    %c0_i32_1 = arith.constant 0 : i32
    return %c0_i32, %c0_i32_0 : i32, i32
  }
  func.func @transform_3(%arg0: i32) -> (i32, i32) {
    %c0_i32 = arith.constant 0 : i32
    %c0_i32_0 = arith.constant 0 : i32
    %c0_i32_1 = arith.constant 0 : i32
    return %c0_i32, %c0_i32_0 : i32, i32
  }
  func.func @transform_4(%arg0: i32) -> (i32, i32) {
    %c0_i32 = arith.constant 0 : i32
    %c0_i32_0 = arith.constant 0 : i32
    %c0_i32_1 = arith.constant 0 : i32
    return %c0_i32, %c0_i32_0 : i32, i32
  }
  func.func @transform_5(%arg0: i32) -> (i32, i32) {
    %c0_i32 = arith.constant 0 : i32
    %c0_i32_0 = arith.constant 0 : i32
    %c0_i32_1 = arith.constant 0 : i32
    return %c0_i32, %c0_i32_0 : i32, i32
  }
  func.func @transform_6(%arg0: i32) -> (i32, i32) {
    %c0_i32 = arith.constant 0 : i32
    %c0_i32_0 = arith.constant 0 : i32
    return %arg0, %c0_i32 : i32, i32
  }
  func.func @transform_7(%arg0: i32) -> (i32, i32) {
    %c0_i32 = arith.constant 0 : i32
    %c0_i32_0 = arith.constant 0 : i32
    return %arg0, %c0_i32 : i32, i32
  }
}

</mosaic_0001>

<llo_original>
// kernel: rnn_attention.1
$region0: #{rnn_attention.1}
  #allocation0 [shape = 'u32[]', space=smem, size = 0x4, offset = 0x4, fixed_abs, tag = 'smem constant byte address 0x4 - core index']
  #allocation1 [shape = 'u32[144,128]{1,0:T(1,128)}', space=vmem, size = 0x12000, scoped, tag = 'internal scratch']
  #allocation2 [shape = 'f32[1,1]{1,0:T(1,128)S(6)}', space=smem, size = 0x200, scoped, tag = 'scoped memory for rnn_attention.1']
  %s0 = inlined_call_operand.hbm [shape: bf16[2,16,32], index: 0, kind: input, shape index: {}]
  %s1 = inlined_call_operand.hbm [shape: f32[2,32], index: 1, kind: input, shape index: {}]
  %s2 = inlined_call_operand.hbm [shape: bf16[32,32], index: 2, kind: input, shape index: {}]
  %s3 = inlined_call_operand.hbm [shape: f32[1,32], index: 3, kind: input, shape index: {}]
  %s4 = inlined_call_operand.hbm [shape: f32[1,32], index: 4, kind: input, shape index: {}]
  %s5 = inlined_call_operand.<no memory space> [shape: f32[1,1], index: 5, kind: input, shape index: {}]
  %s6 = inlined_call_operand.hbm [shape: f32[2,32], index: 6, kind: output, shape index: {0}]
  %s7 = inlined_call_operand.hbm [shape: f32[2,16], index: 7, kind: output, shape index: {1}]
  %8 = xla_tuple %s6, %s7
  %s9 = sld [smem:[#allocation0]]
  $region62: #{rnn_attention.1} parent=0
    _
  %s11 = ssub.s32 1, %s9
  %s12 = scalar_select 0, %s11, %s9
  %13 = sst [smem:[#allocation2]] %s5
  $region1: #{rnn_attention.1} parent=0
    #allocation3 [shape = 'u8[8192]{0}', space=vmem, size = 0x2000, scoped, tag = 'input window, operand 0, single buffered']
    #allocation4 [shape = 's32[1]{0}', space=sflag, size = 0x4, scoped, tag = 'scoped memory for rnn_attention.1']
    #allocation5 [shape = 's32[1]{0}', space=sflag, size = 0x4, scoped, tag = 'scoped memory for rnn_attention.1']
    #allocation6 [shape = 'u8[1024]{0}', space=vmem, size = 0x400, scoped, tag = 'input window, operand 1, single buffered']
    #allocation7 [shape = 's32[1]{0}', space=sflag, size = 0x4, scoped, tag = 'scoped memory for rnn_attention.1']
    #allocation8 [shape = 'u8[8192]{0}', space=vmem, size = 0x2000, scoped, tag = 'input window, operand 2, single buffered']
    #allocation9 [shape = 'u8[512]{0}', space=vmem, size = 0x400, scoped, tag = 'input window, operand 3, single buffered']
    #allocation10 [shape = 's32[1]{0}', space=sflag, size = 0x4, scoped, tag = 'scoped memory for rnn_attention.1']
    #allocation11 [shape = 'u8[512]{0}', space=vmem, size = 0x400, scoped, tag = 'input window, operand 4, single buffered']
    #allocation12 [shape = 'u8[1024]{0}', space=vmem, size = 0x400, scoped, tag = 'output window, operand 0, single buffered']
    #allocation13 [shape = 'u8[1024]{0}', space=vmem, size = 0x400, scoped, tag = 'output window, operand 1, single buffered']
    #allocation14 [shape = 's32[1]{0}', space=sflag, size = 0x4, scoped, tag = 'scoped memory for rnn_attention.1']
    %14 = vsyncpa [#allocation4], 0
    %15 = vsyncpa [#allocation7], 0
    %16 = vsyncpa [#allocation10], 0
    %17 = vsyncpa [#allocation5], 0
    %18 = vsyncpa [#allocation14], 0
    // Predicated region
    $region2: #{rnn_attention.1} parent=1 // pred_check
      _
    $region3: #{rnn_attention.1} parent=1 // pred_check_branch
      %20 = sbr.rel (0) target = $region5
    $region4: #{rnn_attention.1} parent=1 // pred_region
      %s22 = ssub.s32 256, 256
      %23 = vsyncadd [#allocation4], %s22
      %s24 = sshll.u32 [#allocation3], 4
      %s25 = int_to_ptr.vmem [resolvable:$true] %s24
      %30 = dma.hbm_to_vmem [thread:$0]  %s0, 256, %s25, [#allocation4], 64, 64, 4
    $region5: #{rnn_attention.1} parent=1 // pred_fallthru
      _
    // Predicated region
    $region6: #{rnn_attention.1} parent=1 // pred_check
      _
    $region7: #{rnn_attention.1} parent=1 // pred_check_branch
      %32 = sbr.rel (0) target = $region9
    $region8: #{rnn_attention.1} parent=1 // pred_region
      %s34 = ssub.s32 32, 32
      %35 = vsyncadd [#allocation7], %s34
      %s37 = sshll.u32 [#allocation6], 4
      %s38 = int_to_ptr.vmem [resolvable:$true] %s37
      %40 = dma.hbm_to_vmem [thread:$0]  %s1, 32, %s38, [#allocation7]
    $region9: #{rnn_attention.1} parent=1 // pred_fallthru
      _
    // Predicated region
    $region10: #{rnn_attention.1} parent=1 // pred_check
      _
    $region11: #{rnn_attention.1} parent=1 // pred_check_branch
      %42 = sbr.rel (0) target = $region13
    $region12: #{rnn_attention.1} parent=1 // pred_region
      %s44 = ssub.s32 256, 256
      %45 = vsyncadd [#allocation7], %s44
      %s46 = sshll.u32 [#allocation8], 4
      %s47 = int_to_ptr.vmem [resolvable:$true] %s46
      %52 = dma.hbm_to_vmem [thread:$0]  %s2, 256, %s47, [#allocation7], 64, 64, 4
    $region13: #{rnn_attention.1} parent=1 // pred_fallthru
      _
    // Predicated region
    $region14: #{rnn_attention.1} parent=1 // pred_check
      _
    $region15: #{rnn_attention.1} parent=1 // pred_check_branch
      %54 = sbr.rel (0) target = $region17
    $region16: #{rnn_attention.1} parent=1 // pred_region
      %s56 = ssub.s32 16, 16
      %57 = vsyncadd [#allocation10], %s56
      %s59 = sshll.u32 [#allocation9], 4
      %s60 = int_to_ptr.vmem [resolvable:$true] %s59
      %62 = dma.hbm_to_vmem [thread:$0]  %s3, 16, %s60, [#allocation10]
    $region17: #{rnn_attention.1} parent=1 // pred_fallthru
      _
    // Predicated region
    $region18: #{rnn_attention.1} parent=1 // pred_check
      _
    $region19: #{rnn_attention.1} parent=1 // pred_check_branch
      %64 = sbr.rel (0) target = $region21
    $region20: #{rnn_attention.1} parent=1 // pred_region
      %s66 = ssub.s32 16, 16
      %67 = vsyncadd [#allocation10], %s66
      %s69 = sshll.u32 [#allocation11], 4
      %s70 = int_to_ptr.vmem [resolvable:$true] %s69
      %72 = dma.hbm_to_vmem [thread:$0]  %s4, 16, %s70, [#allocation10]
    $region21: #{rnn_attention.1} parent=1 // pred_fallthru
      _
    // Predicated region
    $region22: #{rnn_attention.1} parent=1 // pred_check
      _
    $region23: #{rnn_attention.1} parent=1 // pred_check_branch
      %74 = sbr.rel (0) target = $region25
    $region24: #{rnn_attention.1} parent=1 // pred_region
      _
    $region25: #{rnn_attention.1} parent=1 // pred_fallthru
      _
    // Predicated region
    $region26: #{rnn_attention.1} parent=1 // pred_check
      _
    $region27: #{rnn_attention.1} parent=1 // pred_check_branch
      %76 = sbr.rel (0) target = $region29
    $region28: #{rnn_attention.1} parent=1 // pred_region
      %77 = dma.done [#allocation4], 256
    $region29: #{rnn_attention.1} parent=1 // pred_fallthru
      _
    // Predicated region
    $region30: #{rnn_attention.1} parent=1 // pred_check
      _
    $region31: #{rnn_attention.1} parent=1 // pred_check_branch
      %79 = sbr.rel (0) target = $region33
    $region32: #{rnn_attention.1} parent=1 // pred_region
      %80 = dma.done [#allocation7], 32
    $region33: #{rnn_attention.1} parent=1 // pred_fallthru
      _
    // Predicated region
    $region34: #{rnn_attention.1} parent=1 // pred_check
      _
    $region35: #{rnn_attention.1} parent=1 // pred_check_branch
      %82 = sbr.rel (0) target = $region37
    $region36: #{rnn_attention.1} parent=1 // pred_region
      %83 = dma.done [#allocation7], 256
    $region37: #{rnn_attention.1} parent=1 // pred_fallthru
      _
    // Predicated region
    $region38: #{rnn_attention.1} parent=1 // pred_check
      _
    $region39: #{rnn_attention.1} parent=1 // pred_check_branch
      %85 = sbr.rel (0) target = $region41
    $region40: #{rnn_attention.1} parent=1 // pred_region
      %86 = dma.done [#allocation10], 16
    $region41: #{rnn_attention.1} parent=1 // pred_fallthru
      _
    // Predicated region
    $region42: #{rnn_attention.1} parent=1 // pred_check
      _
    $region43: #{rnn_attention.1} parent=1 // pred_check_branch
      %88 = sbr.rel (0) target = $region45
    $region44: #{rnn_attention.1} parent=1 // pred_region
      %89 = dma.done [#allocation10], 16
    $region45: #{rnn_attention.1} parent=1 // pred_fallthru
      _
    %v91 = vld [vmem:[#allocation3] sm:$0xf]
    %v92 = vld [vmem:[#allocation3 + $0x4] sm:$0xf]
    %v93 = vld [vmem:[#allocation3 + $0x8] sm:$0xf]
    %v94 = vld [vmem:[#allocation3 + $0xc] sm:$0xf]
    %v95 = vunpack.c.l.bf16 %v91
    %v96 = vunpack.c.l.bf16 %v92
    %v97 = vunpack.c.l.bf16 %v93
    %v98 = vunpack.c.l.bf16 %v94
    %v99 = vpack.c.bf16 %v96, %v95
    %v100 = vpack.c.bf16 %v98, %v97
    %v101 = vld [vmem:[#allocation8] sm:$0xf]
    %v102 = vld [vmem:[#allocation8 + $0x4] sm:$0xf]
    %v103 = vld [vmem:[#allocation8 + $0x8] sm:$0xf]
    %v104 = vld [vmem:[#allocation8 + $0xc] sm:$0xf]
    %v109 = vunpack.c.l.b16 %v101
    %v110 = vunpack.c.l.b16 %v102
    %v111 = vunpack.c.l.b16 %v103
    %v112 = vunpack.c.l.b16 %v104
    %v113 = vpack.c.b16 %v110, %v109
    %v114 = vpack.c.b16 %v112, %v111
    %vm117 = vcmask 261120
    %v119 = vsel %vm117, %v99, 0
    %v122 = vsel %vm117, %v100, 0
    %124 = vmatprep.subr.bf16.mxu0 0
    %125 = vmatpush1.bf16.msra.mxu0 %v113
    %126 = vmatprep.subr.bf16.mxu0 0
    %127 = vmatpush1.bf16.msra.mxu0 %v114
    %128 = vmatprep.subr.bf16.mxu0 0
    %129 = vmatpush1.bf16.msra.mxu0 0
    %130 = vmatprep.subr.bf16.mxu0 0
    %131 = vmatpush1.bf16.msra.mxu0 0
    %132 = vmatprep.subr.bf16.mxu0 0
    %133 = vmatpush1.bf16.msra.mxu0 0
    %134 = vmatprep.subr.bf16.mxu0 0
    %135 = vmatpush1.bf16.msra.mxu0 0
    %136 = vmatprep.subr.bf16.mxu0 0
    %137 = vmatpush1.bf16.msra.mxu0 0
    %138 = vmatprep.subr.bf16.mxu0 0
    %139 = vmatpush1.bf16.msra.mxu0 0
    %140 = vmatprep.subr.bf16.mxu0 0
    %141 = vmatpush1.bf16.msra.mxu0 0
    %142 = vmatprep.subr.bf16.mxu0 0
    %143 = vmatpush1.bf16.msra.mxu0 0
    %144 = vmatprep.subr.bf16.mxu0 0
    %145 = vmatpush1.bf16.msra.mxu0 0
    %146 = vmatprep.subr.bf16.mxu0 0
    %147 = vmatpush1.bf16.msra.mxu0 0
    %148 = vmatprep.subr.bf16.mxu0 0
    %149 = vmatpush1.bf16.msra.mxu0 0
    %150 = vmatprep.subr.bf16.mxu0 0
    %151 = vmatpush1.bf16.msra.mxu0 0
    %152 = vmatprep.subr.bf16.mxu0 0
    %153 = vmatpush1.bf16.msra.mxu0 0
    %154 = vmatprep.subr.bf16.mxu0 0
    %155 = vmatpush1.bf16.msra.mxu0 0
    %156 = vmatprep.mubr.bf16.mxu0 0
    %157 = vmatmul.mubr.bf16.gmra.mrb[0].mxu0 %v119
    %v158 = vpop.f32.mrb[0].mxu0
    %v159 = vadd.f32 0.0, %v158
    %v160 = vpop.f32.mrb[0].mxu0
    %v161 = vpop.f32.mrb[0].mxu0
    %v162 = vadd.f32 0.0, %v161
    %v163 = vpop.f32.mrb[0].mxu0
    %164 = vmatprep.mubr.bf16.mxu0 0
    %165 = vmatmul.mubr.bf16.gmra.mrb[0].mxu0 %v122
    %v166 = vpop.f32.mrb[0].mxu0
    %v167 = vadd.f32 0.0, %v166
    %v168 = vpop.f32.mrb[0].mxu0
    %v169 = vpop.f32.mrb[0].mxu0
    %v170 = vadd.f32 0.0, %v169
    %v171 = vpop.f32.mrb[0].mxu0
    %172 = vdwg.mxu0
    %v173 = vld [vmem:[#allocation9] sm:$0x1]
    %v175 = vlaneseq
    %v176 = vshrl.u32 %v175, 7
    %v177 = vsub.s32 0, %v176
    %v178 = vrot.slane %v173, %v177
    %v180 = vadd.f32 %v159, %v178
    %v181 = vadd.f32 %v162, %v178
    %v182 = vadd.f32 %v167, %v178
    %v183 = vadd.f32 %v170, %v178
    %v184 = vld [vmem:[#allocation6] sm:$0x3]
    %v187 = vunpack.c.l.s4 1966171168
    %v188 = vunpack.c.0.s8 %v187
    %v189 = vlaneseq
    %v190 = vshrl.u32 %v189, 7
    %v191 = vsub.s32 %v188, %v190
    %v192 = vrot.slane %v184, %v191
    %v193 = vcombine.high %v192, %v192
    %v195 = vunpack.c.l.s4 1966171168
    %v196 = vunpack.c.0.s8 %v195
    %v197 = vlaneseq
    %v198 = vshrl.u32 %v197, 7
    %v199 = vsub.s32 %v196, %v198
    %v200 = vrot.slane %v192, %v199
    %v202 = vunpack.c.l.s4 1966171168
    %v203 = vunpack.c.0.s8 %v202
    %v204 = vlaneseq
    %v205 = vshrl.u32 %v204, 7
    %v206 = vsub.s32 %v203, %v205
    %v207 = vrot.slane %v193, %v206
    %v208 = vlaneseq
    %v209 = vshrl.u32 %v208, 7
    %v210 = vsub.s32 0, %v209
    %v211 = vrot.slane %v200, %v210
    %v212 = vlaneseq
    %v213 = vshrl.u32 %v212, 7
    %v214 = vsub.s32 0, %v213
    %v215 = vrot.slane %v207, %v214
    %v218 = vadd.f32 %v180, %v211
    %v219 = vadd.f32 %v181, %v211
    %v220 = vadd.f32 %v182, %v215
    %v221 = vadd.f32 %v183, %v215
    %v222 = vmax.f32 %v218, 0.0
    %v223 = vmax.f32 %v219, 0.0
    %v224 = vmax.f32 %v220, 0.0
    %v225 = vmax.f32 %v221, 0.0
    %v226 = vld [vmem:[#allocation11] sm:$0x1]
    %v228 = vlaneseq
    %v229 = vshrl.u32 %v228, 7
    %v230 = vsub.s32 0, %v229
    %v231 = vrot.slane %v226, %v230
    %v233 = vmul.f32 %v222, %v231
    %v234 = vmul.f32 %v223, %v231
    %v235 = vmul.f32 %v224, %v231
    %v236 = vmul.f32 %v225, %v231
    %v237 = vsel %vm117, %v233, 0.0
    %238 = vadd.xlane.f32.xlu0 %v237
    %v239 = vpop.xlane.xlu0 %238
    %v240 = vsel %vm117, %v234, 0.0
    %241 = vadd.xlane.f32.xlu0 %v240
    %v242 = vpop.xlane.xlu0 %241
    %v243 = vsel %vm117, %v235, 0.0
    %244 = vadd.xlane.f32.xlu0 %v243
    %v245 = vpop.xlane.xlu0 %244
    %v246 = vsel %vm117, %v236, 0.0
    %247 = vadd.xlane.f32.xlu0 %v246
    %v248 = vpop.xlane.xlu0 %247
    %s249 = sld [smem:[#allocation2]]
    %v250 = vstv %s249
    %v251 = vadd.f32 %v239, %v250
    %v252 = vadd.f32 %v242, %v250
    %v253 = vadd.f32 %v245, %v250
    %v254 = vadd.f32 %v248, %v250
    %v259 = vlaneseq
    %v260 = vand.u32 %v259, 127
    %v261 = vlaneseq
    %v262 = vshrl.u32 %v261, 7
    %v263 = vsub.s32 %v260, %v262
    %v264 = vrot.slane %v251, %v263
    %v265 = vadd.s32 %v260, 4294967288
    %v266 = vlaneseq
    %v267 = vshrl.u32 %v266, 7
    %v268 = vsub.s32 %v265, %v267
    %v269 = vrot.slane %v252, %v268
    %vm270 = vcmask 130112
    %v271 = vsel %vm270, %v269, %v264
    %v272 = vlaneseq
    %v273 = vshrl.u32 %v272, 7
    %v274 = vsub.s32 %v260, %v273
    %v275 = vrot.slane %v253, %v274
    %v276 = vlaneseq
    %v277 = vshrl.u32 %v276, 7
    %v278 = vsub.s32 %v265, %v277
    %v279 = vrot.slane %v254, %v278
    %v280 = vsel %vm270, %v279, %v275
    %vm281 = vcmask 1041409
    %v282 = vsel %vm281, %v280, %v271
    %vm284 = vcmask 123904
    %v285 = vsel %vm284, %v282, -inf
    %286 = vmax.xlane.f32.xlu0 %v285
    %v287 = vpop.xlane.xlu0 %286
    %v289 = vlaneseq
    %v290 = vshrl.u32 %v289, 7
    %v291 = vsub.s32 0, %v290
    %v292 = vrot.slane %v287, %v291
    %v293 = vlaneseq
    %v294 = vshrl.u32 %v293, 7
    %v295 = vsub.s32 1, %v294
    %v296 = vrot.slane %v287, %v295
    %v299 = vsub.f32 %v251, %v292
    %v300 = vsub.f32 %v252, %v292
    %v301 = vsub.f32 %v253, %v296
    %v302 = vsub.f32 %v254, %v296
    %v303 = vmul.f32 %v299, 1.442695
    %v304 = vpow.pop %v303
    %v305 = vmul.f32 %v300, 1.442695
    %v306 = vpow.pop %v305
    %v307 = vmul.f32 %v301, 1.442695
    %v308 = vpow.pop %v307
    %v309 = vmul.f32 %v302, 1.442695
    %v310 = vpow.pop %v309
    %315 = vset.pattern.permute.xlu0 0
    %316 = vperm.xlu0 %315, %v304
    %v317 = vpop.permute.xlu0 %316
    %318 = vset.pattern.permute.xlu0 0
    %319 = vperm.xlu0 %318, %v306
    %v320 = vpop.permute.xlu0 %319
    %321 = vset.pattern.permute.xlu0 0
    %322 = vperm.xlu0 %321, %v308
    %v323 = vpop.permute.xlu0 %322
    %324 = vset.pattern.permute.xlu0 0
    %325 = vperm.xlu0 %324, %v310
    %v326 = vpop.permute.xlu0 %325
    %v327 = vlaneseq
    %v328 = vshrl.u32 %v327, 7
    %v329 = vsub.s32 %v260, %v328
    %v330 = vrot.slane %v317, %v329
    %v331 = vlaneseq
    %v332 = vshrl.u32 %v331, 7
    %v333 = vsub.s32 %v265, %v332
    %v334 = vrot.slane %v320, %v333
    %v335 = vsel %vm270, %v334, %v330
    %v336 = vlaneseq
    %v337 = vshrl.u32 %v336, 7
    %v338 = vsub.s32 %v260, %v337
    %v339 = vrot.slane %v323, %v338
    %v340 = vlaneseq
    %v341 = vshrl.u32 %v340, 7
    %v342 = vsub.s32 %v265, %v341
    %v343 = vrot.slane %v326, %v342
    %v344 = vsel %vm270, %v343, %v339
    %v345 = vsel %vm281, %v344, %v335
    %v347 = vsel %vm284, %v345, 0.0
    %348 = vadd.xlane.f32.xlu0 %v347
    %v349 = vpop.xlane.xlu0 %348
    %v350 = vrcp.pop %v349
    %v352 = vlaneseq
    %v353 = vshrl.u32 %v352, 7
    %v354 = vsub.s32 0, %v353
    %v355 = vrot.slane %v350, %v354
    %v356 = vlaneseq
    %v357 = vshrl.u32 %v356, 7
    %v358 = vsub.s32 1, %v357
    %v359 = vrot.slane %v350, %v358
    %v362 = vmul.f32 %v304, %v355
    %v363 = vmul.f32 %v306, %v355
    %v364 = vmul.f32 %v308, %v359
    %v365 = vmul.f32 %v310, %v359
    %367 = vset.pattern.permute.xlu0 0
    %368 = vperm.xlu0 %367, %v362
    %v369 = vpop.permute.xlu0 %368
    %372 = vset.pattern.permute.xlu0 0
    %373 = vperm.xlu0 %372, %v363
    %v374 = vpop.permute.xlu0 %373
    %377 = vset.pattern.permute.xlu0 0
    %378 = vperm.xlu0 %377, %v364
    %v379 = vpop.permute.xlu0 %378
    %382 = vset.pattern.permute.xlu0 0
    %383 = vperm.xlu0 %382, %v365
    %v384 = vpop.permute.xlu0 %383
    %v386 = vmul.f32 %v95, %v369
    %v387 = vmul.f32 %v96, %v374
    %v388 = vmul.f32 %v97, %v379
    %v389 = vmul.f32 %v98, %v384
    %v390 = vsel %vm117, %v386, 0.0
    %v391 = vsel %vm117, %v387, 0.0
    %v392 = vadd.f32 %v390, %v391
    %v393 = vrot.slane %v392, 4
    %v394 = vadd.f32 %v392, %v393
    %v395 = vrot.slane %v394, 2
    %v396 = vadd.f32 %v394, %v395
    %v397 = vrot.slane %v396, 1
    %v398 = vadd.f32 %v396, %v397
    %v399 = vsel %vm117, %v388, 0.0
    %v400 = vsel %vm117, %v389, 0.0
    %v401 = vadd.f32 %v399, %v400
    %v402 = vrot.slane %v401, 4
    %v403 = vadd.f32 %v401, %v402
    %v404 = vrot.slane %v403, 2
    %v405 = vadd.f32 %v403, %v404
    %v406 = vrot.slane %v405, 1
    %v407 = vadd.f32 %v405, %v406
    %v410 = vsel %vm281, %v407, %v398
    %vm412 = vcmask 254976
    %413 = vst.msk [vmem:[#allocation12] sm:$0x3] %vm412, %v410
    %v414 = vlaneseq
    %v415 = vshrl.u32 %v414, 7
    %v416 = vsub.s32 %v260, %v415
    %v417 = vrot.slane %v369, %v416
    %v418 = vlaneseq
    %v419 = vshrl.u32 %v418, 7
    %v420 = vsub.s32 %v265, %v419
    %v421 = vrot.slane %v374, %v420
    %v422 = vsel %vm270, %v421, %v417
    %v423 = vlaneseq
    %v424 = vshrl.u32 %v423, 7
    %v425 = vsub.s32 %v260, %v424
    %v426 = vrot.slane %v379, %v425
    %v427 = vlaneseq
    %v428 = vshrl.u32 %v427, 7
    %v429 = vsub.s32 %v265, %v428
    %v430 = vrot.slane %v384, %v429
    %v431 = vsel %vm270, %v430, %v426
    %v432 = vsel %vm281, %v431, %v422
    %434 = vst.msk [vmem:[#allocation13] sm:$0x3] %vm284, %v432
    // Predicated region
    $region46: #{rnn_attention.1} parent=1 // pred_check
      _
    $region47: #{rnn_attention.1} parent=1 // pred_check_branch
      %436 = sbr.rel (0) target = $region49
    $region48: #{rnn_attention.1} parent=1 // pred_region
      %s438 = ssub.s32 32, 32
      %439 = vsyncadd [#allocation5], %s438
      %s441 = sshll.u32 [#allocation12], 4
      %s442 = int_to_ptr.vmem [resolvable:$true] %s441
      %444 = dma.vmem_to_hbm [thread:$0]  %s442, 32, %s6, [#allocation5]
    $region49: #{rnn_attention.1} parent=1 // pred_fallthru
      _
    // Predicated region
    $region50: #{rnn_attention.1} parent=1 // pred_check
      _
    $region51: #{rnn_attention.1} parent=1 // pred_check_branch
      %446 = sbr.rel (0) target = $region53
    $region52: #{rnn_attention.1} parent=1 // pred_region
      %s448 = ssub.s32 32, 32
      %449 = vsyncadd [#allocation14], %s448
      %s451 = sshll.u32 [#allocation13], 4
      %s452 = int_to_ptr.vmem [resolvable:$true] %s451
      %454 = dma.vmem_to_hbm [thread:$0]  %s452, 32, %s7, [#allocation14]
    $region53: #{rnn_attention.1} parent=1 // pred_fallthru
      _
    // Predicated region
    $region54: #{rnn_attention.1} parent=1 // pred_check
      _
    $region55: #{rnn_attention.1} parent=1 // pred_check_branch
      %456 = sbr.rel (0) target = $region57
    $region56: #{rnn_attention.1} parent=1 // pred_region
      %457 = dma.done [#allocation5], 32
    $region57: #{rnn_attention.1} parent=1 // pred_fallthru
      _
    // Predicated region
    $region58: #{rnn_attention.1} parent=1 // pred_check
      _
    $region59: #{rnn_attention.1} parent=1 // pred_check_branch
      %459 = sbr.rel (0) target = $region61
    $region60: #{rnn_attention.1} parent=1 // pred_region
      %460 = dma.done [#allocation14], 32
    $region61: #{rnn_attention.1} parent=1 // pred_fallthru
      _
    %461 = vsyncpa [#allocation4], 1
    %462 = vsyncpa [#allocation7], 1
    %463 = vsyncpa [#allocation10], 1
    %464 = vsyncpa [#allocation5], 1
    %465 = vsyncpa [#allocation14], 1

</llo_original>
